<compile_context>
chip_gen: v5e
topology: v5e:2x2
jax: 0.10.0
libtpu: 0.0.40
codegen_flags: <defaults>
</compile_context>

<pallas_src>
import functools

import jax
import jax.numpy as jnp
from jax.experimental import pallas as pl
from jax.experimental.pallas import tpu as pltpu


def _round_up(x: int, m: int) -> int:
    return (x + m - 1) // m * m


def _cdiv(a: int, b: int) -> int:
    return -(-a // b)


def _gru_cell_kernel(x_ref, h_ref, wx_ref, wh_ref, bx_ref, bh_ref, out_ref,
                     *, hp: int):
    f32 = jnp.float32
    # Two MXU pushes: bf16 operands, f32 accumulation; bias adds in f32.
    zx = jnp.dot(x_ref[...], wx_ref[...], preferred_element_type=f32) + bx_ref[...]
    zh = jnp.dot(h_ref[...], wh_ref[...], preferred_element_type=f32) + bh_ref[...]

    # hp % 128 == 0, so these slices never cut inside a 128-lane tile.
    resetgate = jax.nn.sigmoid(zx[:, 0:hp] + zh[:, 0:hp])
    inputgate = jax.nn.sigmoid(zx[:, hp:2 * hp] + zh[:, hp:2 * hp])
    newgate = jnp.tanh(zx[:, 2 * hp:3 * hp] + resetgate * zh[:, 2 * hp:3 * hp])

    # h is reused (bf16 -> f32) for the combine. PyTorch's
    #   hy = (1-i)*n + i*h  ==  n + i*(h - n)   (one mul/add fewer).
    h = h_ref[...].astype(f32)
    out_ref[...] = (newgate + inputgate * (h - newgate)).astype(out_ref.dtype)
    # TODO(synk): on v6e/v7x the sigmoid/tanh tail could run in bf16 (bf16 VPU/
    # EUP, ~2x EUP throughput); kept f32 here since v5e has no bf16 VPU/EUP.


def pack_gru_params(w_x2h, b_x2h, w_h2h, b_h2h):
    """One-time packing of PyTorch-layout GRUCell params for the kernel.

    w_x2h: (3H, input_size)   b_x2h: (3H,)      (nn.Linear layout)
    w_h2h: (3H, hidden_size)  b_h2h: (3H,)
    """
    three_h, in_size = w_x2h.shape
    H = three_h // 3
    Hp = _round_up(H, 128)          # lane-dense per-gate width
    Kx = _round_up(in_size, 128)    # MXU-aligned contraction depth (x path)
    f32 = jnp.float32

    def pack_w(w, k_pad):           # (3H, K) PyTorch layout -> (k_pad, 3Hp) bf16
        wt = jnp.transpose(w).astype(f32)                 # (K, 3H)
        gates = [wt[:, g * H:(g + 1) * H] for g in range(3)]
        gates = [jnp.pad(g, ((0, k_pad - wt.shape[0]), (0, Hp - H)))
                 for g in gates]
        return jnp.concatenate(gates, axis=1).astype(jnp.bfloat16)

    def pack_b(b):                  # (3H,) -> (1, 3Hp) f32
        gates = [jnp.pad(b[g * H:(g + 1) * H].astype(f32), (0, Hp - H))
                 for g in range(3)]
        return jnp.concatenate(gates).reshape(1, 3 * Hp)

    return {
        "wx": pack_w(w_x2h, Kx), "wh": pack_w(w_h2h, Hp),
        "bx": pack_b(b_x2h), "bh": pack_b(b_h2h),
        "input_size": in_size, "hidden_size": H, "kx": Kx, "hp": Hp,
    }


def _pick_batch_tile(B: int, target: int = 256):
    """Batch tile that minimizes padding and keeps >= 2 grid steps for v7x."""
    num_tiles = max(_cdiv(B, target), 1)
    if num_tiles == 1 and B >= 32:
        num_tiles = 2               # 2 TensorCores on v7x; free on v5e/v6e
    bm = _round_up(_cdiv(B, num_tiles), 16)
    return bm, bm * num_tiles


def gru_cell_pallas(x, h, params):
    """GRU cell forward (matches PyTorch GRUCell.forward semantics).

    x: (B, input_size), h: (B, hidden_size), params from pack_gru_params().
    """
    B, in_size = x.shape
    H, Hp, Kx = params["hidden_size"], params["hp"], params["kx"]
    assert h.shape == (B, H) and in_size == params["input_size"]

    bm, Bp = _pick_batch_tile(B)
    n_tiles = Bp // bm

    xb = jnp.pad(x.astype(jnp.bfloat16), ((0, Bp - B), (0, Kx - in_size)))
    hb = jnp.pad(h.astype(jnp.bfloat16), ((0, Bp - B), (0, Hp - H)))

    kernel = functools.partial(_gru_cell_kernel, hp=Hp)
    out_dtype = x.dtype
    out_bytes = x.dtype.itemsize

    def run(single_buffer_weights: bool):
        if single_buffer_weights:
            def res_spec(shape):
                return pl.BlockSpec(shape, lambda i: (0, 0),
                                    pipeline_mode=pl.Buffered(buffer_count=1))
            w_bufs = 1
        else:
            def res_spec(shape):
                return pl.BlockSpec(shape, lambda i: (0, 0))
            w_bufs = 2

        # VMEM budget: 2x (double-buffered) per-batch-tile streams
        #            + w_bufs x resident weights/biases
        #            + f32 zx/zh intermediates + headroom.
        tile_io = bm * Kx * 2 + bm * Hp * 2 + bm * Hp * out_bytes
        resident = (Kx + Hp) * 3 * Hp * 2 + 2 * 3 * Hp * 4
        scratch = 2 * bm * 3 * Hp * 4
        vmem_bytes = int(min(max(2 * tile_io + w_bufs * resident + scratch
                                 + (4 << 20), 16 << 20), 48 << 20))
        # TODO(synk): when resident weights exceed ~20 MiB (large H*K on v7x's
        # 64 MiB VMEM), add a gate-column grid axis (and a K-reduction axis
        # with an f32 VMEM accumulator) instead of keeping them fully resident.

        return pl.pallas_call(
            kernel,
            out_shape=jax.ShapeDtypeStruct((Bp, Hp), out_dtype),
            grid=(n_tiles,),
            in_specs=[
                pl.BlockSpec((bm, Kx), lambda i: (i, 0)),      # x tile
                pl.BlockSpec((bm, Hp), lambda i: (i, 0)),      # h tile (bf16)
                res_spec((Kx, 3 * Hp)),                        # Wx resident
                res_spec((Hp, 3 * Hp)),                        # Wh resident
                res_spec((1, 3 * Hp)),                         # bx resident
                res_spec((1, 3 * Hp)),                         # bh resident
            ],
            out_specs=pl.BlockSpec((bm, Hp), lambda i: (i, 0)),
            compiler_params=pltpu.CompilerParams(
                dimension_semantics=("parallel",),
                vmem_limit_bytes=vmem_bytes),
        )(xb, hb, params["wx"], params["wh"], params["bx"], params["bh"])

    try:
        out = run(single_buffer_weights=True)
    except Exception:
        # pl.Buffered(1) not supported on this Pallas version; fall back to
        # the default double-buffered resident weights.
        out = run(single_buffer_weights=False)

    return out[:B, :H]


def gru_cell_ref(x, h, w_x2h, b_x2h, w_h2h, b_h2h,
                 matmul_dtype=jnp.float32, combine_h_dtype=jnp.float32):
    """Pure-JAX reference matching the PyTorch forward.

    matmul_dtype / combine_h_dtype let us build an operand-matched reference
    (bf16 matmul inputs, bf16 h in the final combine) for a tight comparison
    against the kernel.
    """
    gate_x = jnp.dot(x.astype(matmul_dtype), w_x2h.T.astype(matmul_dtype),
                     preferred_element_type=jnp.float32) + b_x2h
    gate_h = jnp.dot(h.astype(matmul_dtype), w_h2h.T.astype(matmul_dtype),
                     preferred_element_type=jnp.float32) + b_h2h
    H = h.shape[1]
    i_r, i_i, i_n = gate_x[:, :H], gate_x[:, H:2 * H], gate_x[:, 2 * H:]
    h_r, h_i, h_n = gate_h[:, :H], gate_h[:, H:2 * H], gate_h[:, 2 * H:]
    resetgate = jax.nn.sigmoid(i_r + h_r)
    inputgate = jax.nn.sigmoid(i_i + h_i)
    newgate = jnp.tanh(i_n + resetgate * h_n)
    h_c = h.astype(combine_h_dtype).astype(jnp.float32)
    return (1.0 - inputgate) * newgate + inputgate * h_c


if __name__ == "__main__":
    B, INPUT_SIZE, HIDDEN_SIZE = 8, 16, 32

    key = jax.random.PRNGKey(0)
    kx, kh, kw1, kb1, kw2, kb2 = jax.random.split(key, 6)

    # PyTorch nn.Linear default init: U(-1/sqrt(fan_in), 1/sqrt(fan_in)).
    bound_x = 1.0 / (INPUT_SIZE ** 0.5)
    bound_h = 1.0 / (HIDDEN_SIZE ** 0.5)
    w_x2h = jax.random.uniform(kw1, (3 * HIDDEN_SIZE, INPUT_SIZE),
                               jnp.float32, -bound_x, bound_x)
    b_x2h = jax.random.uniform(kb1, (3 * HIDDEN_SIZE,),
                               jnp.float32, -bound_x, bound_x)
    w_h2h = jax.random.uniform(kw2, (3 * HIDDEN_SIZE, HIDDEN_SIZE),
                               jnp.float32, -bound_h, bound_h)
    b_h2h = jax.random.uniform(kb2, (3 * HIDDEN_SIZE,),
                               jnp.float32, -bound_h, bound_h)

    x = jax.random.normal(kx, (B, INPUT_SIZE), jnp.float32)
    h = jax.random.normal(kh, (B, HIDDEN_SIZE), jnp.float32)

    params = pack_gru_params(w_x2h, b_x2h, w_h2h, b_h2h)   # pack once, reuse
    hy = gru_cell_pallas(x, h, params)
    hy = jax.block_until_ready(hy)
    assert hy.shape == (B, HIDDEN_SIZE)

    # Tight check: reference with the same bf16 operand casts (matmuls + the
    # h used in the final combine).
    hy_bf16_ref = gru_cell_ref(x, h, w_x2h, b_x2h, w_h2h, b_h2h,
                               matmul_dtype=jnp.bfloat16,
                               combine_h_dtype=jnp.bfloat16)
    err_bf16 = float(jnp.max(jnp.abs(hy - hy_bf16_ref)))
    assert err_bf16 < 1e-3, f"bf16-matched max abs err {err_bf16}"

    # Sanity check against the full-f32 PyTorch-equivalent reference.
    hy_f32_ref = gru_cell_ref(x, h, w_x2h, b_x2h, w_h2h, b_h2h)
    err_f32 = float(jnp.max(jnp.abs(hy - hy_f32_ref)))
    assert err_f32 < 5e-2, f"f32 reference max abs err {err_f32}"

    print("KERNEL_OK")
</pallas_src>

<mosaic_0001>
module attributes {stable_mosaic.version = 11 : i64} {
  func.func @_gru_cell_kernel(%arg0: i32, %arg1: memref<16x128xbf16, #tpu.memory_space<vmem>>, %arg2: memref<16x128xbf16, #tpu.memory_space<vmem>>, %arg3: memref<128x384xbf16, #tpu.memory_space<vmem>>, %arg4: memref<128x384xbf16, #tpu.memory_space<vmem>>, %arg5: memref<1x384xf32, #tpu.memory_space<vmem>>, %arg6: memref<1x384xf32, #tpu.memory_space<vmem>>, %arg7: memref<16x128xf32, #tpu.memory_space<vmem>>) attributes {dimension_semantics = [#tpu.dimension_semantics<parallel>], iteration_bounds = array<i64: 1>, scalar_prefetch = 0 : i64, scratch_operands = 0 : i64, tpu.core_type = #tpu.core_type<tc>, window_params = [{transform_indices = @transform_0, window_bounds = array<i64: 16, 128>}, {transform_indices = @transform_1, window_bounds = array<i64: 16, 128>}, {pipeline_mode = #tpu.pipeline_mode<synchronous>, transform_indices = @transform_2, window_bounds = array<i64: 128, 384>}, {pipeline_mode = #tpu.pipeline_mode<synchronous>, transform_indices = @transform_3, window_bounds = array<i64: 128, 384>}, {pipeline_mode = #tpu.pipeline_mode<synchronous>, transform_indices = @transform_4, window_bounds = array<i64: 1, 384>}, {pipeline_mode = #tpu.pipeline_mode<synchronous>, transform_indices = @transform_5, window_bounds = array<i64: 1, 384>}, {transform_indices = @transform_6, window_bounds = array<i64: 16, 128>}]} {
    %c0 = arith.constant 0 : index
    %c0_0 = arith.constant 0 : index
    %0 = vector.load %arg1[%c0, %c0_0] : memref<16x128xbf16, #tpu.memory_space<vmem>>, vector<16x128xbf16>
    %c0_1 = arith.constant 0 : index
    %c0_2 = arith.constant 0 : index
    %1 = vector.load %arg3[%c0_1, %c0_2] : memref<128x384xbf16, #tpu.memory_space<vmem>>, vector<128x384xbf16>
    %cst = arith.constant dense<0.000000e+00> : vector<16x384xf32>
    %2 = tpu.matmul %0, %1, %cst {dimension_numbers = #tpu.dot_dimension_numbers<[1], [0], [0], [1], [0, 0, 1, 1], [], []>} : vector<16x128xbf16>, vector<128x384xbf16>, vector<16x384xf32> -> vector<16x384xf32>
    %c0_3 = arith.constant 0 : index
    %c0_4 = arith.constant 0 : index
    %3 = vector.load %arg5[%c0_3, %c0_4] : memref<1x384xf32, #tpu.memory_space<vmem>>, vector<1x384xf32>
    %4 = vector.broadcast %3 : vector<1x384xf32> to vector<16x384xf32>
    %5 = arith.addf %2, %4 : vector<16x384xf32>
    %c0_5 = arith.constant 0 : index
    %c0_6 = arith.constant 0 : index
    %6 = vector.load %arg2[%c0_5, %c0_6] : memref<16x128xbf16, #tpu.memory_space<vmem>>, vector<16x128xbf16>
    %c0_7 = arith.constant 0 : index
    %c0_8 = arith.constant 0 : index
    %7 = vector.load %arg4[%c0_7, %c0_8] : memref<128x384xbf16, #tpu.memory_space<vmem>>, vector<128x384xbf16>
    %cst_9 = arith.constant dense<0.000000e+00> : vector<16x384xf32>
    %8 = tpu.matmul %6, %7, %cst_9 {dimension_numbers = #tpu.dot_dimension_numbers<[1], [0], [0], [1], [0, 0, 1, 1], [], []>} : vector<16x128xbf16>, vector<128x384xbf16>, vector<16x384xf32> -> vector<16x384xf32>
    %c0_10 = arith.constant 0 : index
    %c0_11 = arith.constant 0 : index
    %9 = vector.load %arg6[%c0_10, %c0_11] : memref<1x384xf32, #tpu.memory_space<vmem>>, vector<1x384xf32>
    %10 = vector.broadcast %9 : vector<1x384xf32> to vector<16x384xf32>
    %11 = arith.addf %8, %10 : vector<16x384xf32>
    %12 = vector.extract_strided_slice %5 {offsets = [0, 0], sizes = [16, 128], strides = [1, 1]} : vector<16x384xf32> to vector<16x128xf32>
    %13 = vector.extract_strided_slice %11 {offsets = [0, 0], sizes = [16, 128], strides = [1, 1]} : vector<16x384xf32> to vector<16x128xf32>
    %14 = arith.addf %12, %13 : vector<16x128xf32>
    %15 = arith.negf %14 : vector<16x128xf32>
    %16 = math.exp %15 : vector<16x128xf32>
    %cst_12 = arith.constant 1.000000e+00 : f32
    %17 = vector.broadcast %cst_12 : f32 to vector<16x128xf32>
    %18 = arith.addf %17, %16 : vector<16x128xf32>
    %19 = arith.divf %17, %18 : vector<16x128xf32>
    %20 = vector.extract_strided_slice %5 {offsets = [0, 128], sizes = [16, 128], strides = [1, 1]} : vector<16x384xf32> to vector<16x128xf32>
    %21 = vector.extract_strided_slice %11 {offsets = [0, 128], sizes = [16, 128], strides = [1, 1]} : vector<16x384xf32> to vector<16x128xf32>
    %22 = arith.addf %20, %21 : vector<16x128xf32>
    %23 = arith.negf %22 : vector<16x128xf32>
    %24 = math.exp %23 : vector<16x128xf32>
    %cst_13 = arith.constant 1.000000e+00 : f32
    %25 = vector.broadcast %cst_13 : f32 to vector<16x128xf32>
    %26 = arith.addf %25, %24 : vector<16x128xf32>
    %27 = arith.divf %25, %26 : vector<16x128xf32>
    %28 = vector.extract_strided_slice %5 {offsets = [0, 256], sizes = [16, 128], strides = [1, 1]} : vector<16x384xf32> to vector<16x128xf32>
    %29 = vector.extract_strided_slice %11 {offsets = [0, 256], sizes = [16, 128], strides = [1, 1]} : vector<16x384xf32> to vector<16x128xf32>
    %30 = arith.mulf %19, %29 : vector<16x128xf32>
    %31 = arith.addf %28, %30 : vector<16x128xf32>
    %32 = math.tanh %31 : vector<16x128xf32>
    %c0_14 = arith.constant 0 : index
    %c0_15 = arith.constant 0 : index
    %33 = vector.load %arg2[%c0_14, %c0_15] : memref<16x128xbf16, #tpu.memory_space<vmem>>, vector<16x128xbf16>
    %34 = arith.extf %33 : vector<16x128xbf16> to vector<16x128xf32>
    %35 = arith.subf %34, %32 : vector<16x128xf32>
    %36 = arith.mulf %27, %35 : vector<16x128xf32>
    %37 = arith.addf %32, %36 : vector<16x128xf32>
    %c0_16 = arith.constant 0 : index
    %c0_17 = arith.constant 0 : index
    %38 = vector.load %arg7[%c0_16, %c0_17] : memref<16x128xf32, #tpu.memory_space<vmem>>, vector<16x128xf32>
    tpu.vector_store %arg7[%c0_16, %c0_17], %37 {strides = array<i32>} : memref<16x128xf32, #tpu.memory_space<vmem>>, vector<16x128xf32>,
    return
  }
  func.func @transform_0(%arg0: i32) -> (i32, i32) {
    %c0_i32 = arith.constant 0 : i32
    %c0_i32_0 = arith.constant 0 : i32
    return %arg0, %c0_i32 : i32, i32
  }
  func.func @transform_1(%arg0: i32) -> (i32, i32) {
    %c0_i32 = arith.constant 0 : i32
    %c0_i32_0 = arith.constant 0 : i32
    return %arg0, %c0_i32 : i32, i32
  }
  func.func @transform_2(%arg0: i32) -> (i32, i32) {
    %c0_i32 = arith.constant 0 : i32
    %c0_i32_0 = arith.constant 0 : i32
    %c0_i32_1 = arith.constant 0 : i32
    return %c0_i32, %c0_i32_0 : i32, i32
  }
  func.func @transform_3(%arg0: i32) -> (i32, i32) {
    %c0_i32 = arith.constant 0 : i32
    %c0_i32_0 = arith.constant 0 : i32
    %c0_i32_1 = arith.constant 0 : i32
    return %c0_i32, %c0_i32_0 : i32, i32
  }
  func.func @transform_4(%arg0: i32) -> (i32, i32) {
    %c0_i32 = arith.constant 0 : i32
    %c0_i32_0 = arith.constant 0 : i32
    %c0_i32_1 = arith.constant 0 : i32
    return %c0_i32, %c0_i32_0 : i32, i32
  }
  func.func @transform_5(%arg0: i32) -> (i32, i32) {
    %c0_i32 = arith.constant 0 : i32
    %c0_i32_0 = arith.constant 0 : i32
    %c0_i32_1 = arith.constant 0 : i32
    return %c0_i32, %c0_i32_0 : i32, i32
  }
  func.func @transform_6(%arg0: i32) -> (i32, i32) {
    %c0_i32 = arith.constant 0 : i32
    %c0_i32_0 = arith.constant 0 : i32
    return %arg0, %c0_i32 : i32, i32
  }
}

module attributes {stable_mosaic.version = 11 : i64} {
  func.func @_gru_cell_kernel(%arg0: i32, %arg1: memref<16x128xbf16, #tpu.memory_space<vmem>>, %arg2: memref<16x128xbf16, #tpu.memory_space<vmem>>, %arg3: memref<128x384xbf16, #tpu.memory_space<vmem>>, %arg4: memref<128x384xbf16, #tpu.memory_space<vmem>>, %arg5: memref<1x384xf32, #tpu.memory_space<vmem>>, %arg6: memref<1x384xf32, #tpu.memory_space<vmem>>, %arg7: memref<16x128xf32, #tpu.memory_space<vmem>>) attributes {dimension_semantics = [#tpu.dimension_semantics<parallel>], iteration_bounds = array<i64: 1>, scalar_prefetch = 0 : i64, scratch_operands = 0 : i64, tpu.core_type = #tpu.core_type<tc>, window_params = [{transform_indices = @transform_0, window_bounds = array<i64: 16, 128>}, {transform_indices = @transform_1, window_bounds = array<i64: 16, 128>}, {pipeline_mode = #tpu.pipeline_mode<synchronous>, transform_indices = @transform_2, window_bounds = array<i64: 128, 384>}, {pipeline_mode = #tpu.pipeline_mode<synchronous>, transform_indices = @transform_3, window_bounds = array<i64: 128, 384>}, {pipeline_mode = #tpu.pipeline_mode<synchronous>, transform_indices = @transform_4, window_bounds = array<i64: 1, 384>}, {pipeline_mode = #tpu.pipeline_mode<synchronous>, transform_indices = @transform_5, window_bounds = array<i64: 1, 384>}, {transform_indices = @transform_6, window_bounds = array<i64: 16, 128>}]} {
    %c0 = arith.constant 0 : index
    %c0_0 = arith.constant 0 : index
    %0 = vector.load %arg1[%c0, %c0_0] : memref<16x128xbf16, #tpu.memory_space<vmem>>, vector<16x128xbf16>
    %c0_1 = arith.constant 0 : index
    %c0_2 = arith.constant 0 : index
    %1 = vector.load %arg3[%c0_1, %c0_2] : memref<128x384xbf16, #tpu.memory_space<vmem>>, vector<128x384xbf16>
    %cst = arith.constant dense<0.000000e+00> : vector<16x384xf32>
    %2 = tpu.matmul %0, %1, %cst {dimension_numbers = #tpu.dot_dimension_numbers<[1], [0], [0], [1], [0, 0, 1, 1], [], []>} : vector<16x128xbf16>, vector<128x384xbf16>, vector<16x384xf32> -> vector<16x384xf32>
    %c0_3 = arith.constant 0 : index
    %c0_4 = arith.constant 0 : index
    %3 = vector.load %arg5[%c0_3, %c0_4] : memref<1x384xf32, #tpu.memory_space<vmem>>, vector<1x384xf32>
    %4 = vector.broadcast %3 : vector<1x384xf32> to vector<16x384xf32>
    %5 = arith.addf %2, %4 : vector<16x384xf32>
    %c0_5 = arith.constant 0 : index
    %c0_6 = arith.constant 0 : index
    %6 = vector.load %arg2[%c0_5, %c0_6] : memref<16x128xbf16, #tpu.memory_space<vmem>>, vector<16x128xbf16>
    %c0_7 = arith.constant 0 : index
    %c0_8 = arith.constant 0 : index
    %7 = vector.load %arg4[%c0_7, %c0_8] : memref<128x384xbf16, #tpu.memory_space<vmem>>, vector<128x384xbf16>
    %cst_9 = arith.constant dense<0.000000e+00> : vector<16x384xf32>
    %8 = tpu.matmul %6, %7, %cst_9 {dimension_numbers = #tpu.dot_dimension_numbers<[1], [0], [0], [1], [0, 0, 1, 1], [], []>} : vector<16x128xbf16>, vector<128x384xbf16>, vector<16x384xf32> -> vector<16x384xf32>
    %c0_10 = arith.constant 0 : index
    %c0_11 = arith.constant 0 : index
    %9 = vector.load %arg6[%c0_10, %c0_11] : memref<1x384xf32, #tpu.memory_space<vmem>>, vector<1x384xf32>
    %10 = vector.broadcast %9 : vector<1x384xf32> to vector<16x384xf32>
    %11 = arith.addf %8, %10 : vector<16x384xf32>
    %12 = vector.extract_strided_slice %5 {offsets = [0, 0], sizes = [16, 128], strides = [1, 1]} : vector<16x384xf32> to vector<16x128xf32>
    %13 = vector.extract_strided_slice %11 {offsets = [0, 0], sizes = [16, 128], strides = [1, 1]} : vector<16x384xf32> to vector<16x128xf32>
    %14 = arith.addf %12, %13 : vector<16x128xf32>
    %15 = arith.negf %14 : vector<16x128xf32>
    %16 = math.exp %15 : vector<16x128xf32>
    %cst_12 = arith.constant 1.000000e+00 : f32
    %17 = vector.broadcast %cst_12 : f32 to vector<16x128xf32>
    %18 = arith.addf %17, %16 : vector<16x128xf32>
    %19 = arith.divf %17, %18 : vector<16x128xf32>
    %20 = vector.extract_strided_slice %5 {offsets = [0, 128], sizes = [16, 128], strides = [1, 1]} : vector<16x384xf32> to vector<16x128xf32>
    %21 = vector.extract_strided_slice %11 {offsets = [0, 128], sizes = [16, 128], strides = [1, 1]} : vector<16x384xf32> to vector<16x128xf32>
    %22 = arith.addf %20, %21 : vector<16x128xf32>
    %23 = arith.negf %22 : vector<16x128xf32>
    %24 = math.exp %23 : vector<16x128xf32>
    %cst_13 = arith.constant 1.000000e+00 : f32
    %25 = vector.broadcast %cst_13 : f32 to vector<16x128xf32>
    %26 = arith.addf %25, %24 : vector<16x128xf32>
    %27 = arith.divf %25, %26 : vector<16x128xf32>
    %28 = vector.extract_strided_slice %5 {offsets = [0, 256], sizes = [16, 128], strides = [1, 1]} : vector<16x384xf32> to vector<16x128xf32>
    %29 = vector.extract_strided_slice %11 {offsets = [0, 256], sizes = [16, 128], strides = [1, 1]} : vector<16x384xf32> to vector<16x128xf32>
    %30 = arith.mulf %19, %29 : vector<16x128xf32>
    %31 = arith.addf %28, %30 : vector<16x128xf32>
    %32 = math.tanh %31 : vector<16x128xf32>
    %c0_14 = arith.constant 0 : index
    %c0_15 = arith.constant 0 : index
    %33 = vector.load %arg2[%c0_14, %c0_15] : memref<16x128xbf16, #tpu.memory_space<vmem>>, vector<16x128xbf16>
    %34 = arith.extf %33 : vector<16x128xbf16> to vector<16x128xf32>
    %35 = arith.subf %34, %32 : vector<16x128xf32>
    %36 = arith.mulf %27, %35 : vector<16x128xf32>
    %37 = arith.addf %32, %36 : vector<16x128xf32>
    %c0_16 = arith.constant 0 : index
    %c0_17 = arith.constant 0 : index
    %38 = vector.load %arg7[%c0_16, %c0_17] : memref<16x128xf32, #tpu.memory_space<vmem>>, vector<16x128xf32>
    tpu.vector_store %arg7[%c0_16, %c0_17], %37 {strides = array<i32>} : memref<16x128xf32, #tpu.memory_space<vmem>>, vector<16x128xf32>,
    return
  }
  func.func @transform_0(%arg0: i32) -> (i32, i32) {
    %c0_i32 = arith.constant 0 : i32
    %c0_i32_0 = arith.constant 0 : i32
    return %arg0, %c0_i32 : i32, i32
  }
  func.func @transform_1(%arg0: i32) -> (i32, i32) {
    %c0_i32 = arith.constant 0 : i32
    %c0_i32_0 = arith.constant 0 : i32
    return %arg0, %c0_i32 : i32, i32
  }
  func.func @transform_2(%arg0: i32) -> (i32, i32) {
    %c0_i32 = arith.constant 0 : i32
    %c0_i32_0 = arith.constant 0 : i32
    %c0_i32_1 = arith.constant 0 : i32
    return %c0_i32, %c0_i32_0 : i32, i32
  }
  func.func @transform_3(%arg0: i32) -> (i32, i32) {
    %c0_i32 = arith.constant 0 : i32
    %c0_i32_0 = arith.constant 0 : i32
    %c0_i32_1 = arith.constant 0 : i32
    return %c0_i32, %c0_i32_0 : i32, i32
  }
  func.func @transform_4(%arg0: i32) -> (i32, i32) {
    %c0_i32 = arith.constant 0 : i32
    %c0_i32_0 = arith.constant 0 : i32
    %c0_i32_1 = arith.constant 0 : i32
    return %c0_i32, %c0_i32_0 : i32, i32
  }
  func.func @transform_5(%arg0: i32) -> (i32, i32) {
    %c0_i32 = arith.constant 0 : i32
    %c0_i32_0 = arith.constant 0 : i32
    %c0_i32_1 = arith.constant 0 : i32
    return %c0_i32, %c0_i32_0 : i32, i32
  }
  func.func @transform_6(%arg0: i32) -> (i32, i32) {
    %c0_i32 = arith.constant 0 : i32
    %c0_i32_0 = arith.constant 0 : i32
    return %arg0, %c0_i32 : i32, i32
  }
}

</mosaic_0001>

<llo_original>
// kernel: tpu_custom_call.1
$region0: #{tpu_custom_call.1}
  #allocation0 [shape = 'u32[]', space=smem, size = 0x4, offset = 0x4, fixed_abs, tag = 'smem constant byte address 0x4 - core index']
  #allocation1 [shape = 'u32[72,128]{1,0:T(1,128)}', space=vmem, size = 0x9000, scoped, tag = 'internal scratch']
  %s0 = inlined_call_operand.hbm [shape: bf16[16,128], index: 0, kind: input, shape index: {}]
  %s1 = inlined_call_operand.hbm [shape: bf16[16,128], index: 1, kind: input, shape index: {}]
  %s2 = inlined_call_operand.hbm [shape: bf16[128,384], index: 2, kind: input, shape index: {}]
  %s3 = inlined_call_operand.hbm [shape: bf16[128,384], index: 3, kind: input, shape index: {}]
  %s4 = inlined_call_operand.vmem [shape: f32[1,384], index: 4, kind: input, shape index: {}]
  %s5 = inlined_call_operand.hbm [shape: f32[1,384], index: 5, kind: input, shape index: {}]
  %s6 = inlined_call_operand.hbm [shape: f32[16,128], index: 6, kind: output, shape index: {}]
  %s7 = sld [smem:[#allocation0]]
  $region54: #{tpu_custom_call.1} parent=0
    _
  %s9 = ssub.s32 1, %s7
  %s10 = scalar_select 0, %s9, %s7
  $region1: #{tpu_custom_call.1} parent=0
    #allocation2 [shape = 'u8[4096]{0}', space=vmem, size = 0x1000, scoped, tag = 'input window, operand 0, single buffered']
    #allocation3 [shape = 's32[1]{0}', space=sflag, size = 0x4, scoped, tag = 'scoped memory for tpu_custom_call.1']
    #allocation4 [shape = 's32[1]{0}', space=sflag, size = 0x4, scoped, tag = 'scoped memory for tpu_custom_call.1']
    #allocation5 [shape = 'u8[4096]{0}', space=vmem, size = 0x1000, scoped, tag = 'input window, operand 1, single buffered']
    #allocation6 [shape = 's32[1]{0}', space=sflag, size = 0x4, scoped, tag = 'scoped memory for tpu_custom_call.1']
    #allocation7 [shape = 'u8[98304]{0}', space=vmem, size = 0x18000, scoped, tag = 'input window, operand 2, single buffered']
    #allocation8 [shape = 'u8[98304]{0}', space=vmem, size = 0x18000, scoped, tag = 'input window, operand 3, single buffered']
    #allocation9 [shape = 's32[1]{0}', space=sflag, size = 0x4, scoped, tag = 'scoped memory for tpu_custom_call.1']
    #allocation10 [shape = 'u8[1536]{0}', space=vmem, size = 0x800, scoped, tag = 'input window, operand 5, single buffered']
    #allocation11 [shape = 'u8[8192]{0}', space=vmem, size = 0x2000, scoped, tag = 'output window, operand 0, single buffered']
    %11 = vsyncpa [#allocation3], 0
    %12 = vsyncpa [#allocation6], 0
    %13 = vsyncpa [#allocation9], 0
    %14 = vsyncpa [#allocation4], 0
    // Predicated region
    $region2: #{tpu_custom_call.1} parent=1 // pred_check
      _
    $region3: #{tpu_custom_call.1} parent=1 // pred_check_branch
      %16 = sbr.rel (0) target = $region5
    $region4: #{tpu_custom_call.1} parent=1 // pred_region
      %18 = vsyncadd [#allocation3], 0
      %s19 = sshll.u32 %s0, 4
      %s20 = int_to_ptr.hbm [resolvable:$true] %s19
      %s21 = sshll.u32 [#allocation2], 4
      %s22 = int_to_ptr.vmem [resolvable:$true] %s21
      %27 = dma.hbm_to_vmem [thread:$0]  %s20, 128, %s22, [#allocation3], 64, 64, 4
    $region5: #{tpu_custom_call.1} parent=1 // pred_fallthru
      _
    // Predicated region
    $region6: #{tpu_custom_call.1} parent=1 // pred_check
      _
    $region7: #{tpu_custom_call.1} parent=1 // pred_check_branch
      %29 = sbr.rel (0) target = $region9
    $region8: #{tpu_custom_call.1} parent=1 // pred_region
      %31 = vsyncadd [#allocation6], 0
      %s32 = sshll.u32 %s1, 4
      %s33 = int_to_ptr.hbm [resolvable:$true] %s32
      %s34 = sshll.u32 [#allocation5], 4
      %s35 = int_to_ptr.vmem [resolvable:$true] %s34
      %40 = dma.hbm_to_vmem [thread:$0]  %s33, 128, %s35, [#allocation6], 64, 64, 4
    $region9: #{tpu_custom_call.1} parent=1 // pred_fallthru
      _
    // Predicated region
    $region10: #{tpu_custom_call.1} parent=1 // pred_check
      _
    $region11: #{tpu_custom_call.1} parent=1 // pred_check_branch
      %42 = sbr.rel (0) target = $region13
    $region12: #{tpu_custom_call.1} parent=1 // pred_region
      %44 = vsyncadd [#allocation6], 0
      %s45 = sshll.u32 %s2, 4
      %s46 = int_to_ptr.hbm [resolvable:$true] %s45
      %s47 = sshll.u32 [#allocation7], 4
      %s48 = int_to_ptr.vmem [resolvable:$true] %s47
      %53 = dma.hbm_to_vmem [thread:$0]  %s46, 3072, %s48, [#allocation6], 192, 192, 12
    $region13: #{tpu_custom_call.1} parent=1 // pred_fallthru
      _
    // Predicated region
    $region14: #{tpu_custom_call.1} parent=1 // pred_check
      _
    $region15: #{tpu_custom_call.1} parent=1 // pred_check_branch
      %55 = sbr.rel (0) target = $region17
    $region16: #{tpu_custom_call.1} parent=1 // pred_region
      %57 = vsyncadd [#allocation9], 0
      %s58 = sshll.u32 %s3, 4
      %s59 = int_to_ptr.hbm [resolvable:$true] %s58
      %s60 = sshll.u32 [#allocation8], 4
      %s61 = int_to_ptr.vmem [resolvable:$true] %s60
      %66 = dma.hbm_to_vmem [thread:$0]  %s59, 3072, %s61, [#allocation9], 192, 192, 12
    $region17: #{tpu_custom_call.1} parent=1 // pred_fallthru
      _
    // Predicated region
    $region18: #{tpu_custom_call.1} parent=1 // pred_check
      _
    $region19: #{tpu_custom_call.1} parent=1 // pred_check_branch
      %68 = sbr.rel (0) target = $region21
    $region20: #{tpu_custom_call.1} parent=1 // pred_region
      _
    $region21: #{tpu_custom_call.1} parent=1 // pred_fallthru
      _
    // Predicated region
    $region22: #{tpu_custom_call.1} parent=1 // pred_check
      _
    $region23: #{tpu_custom_call.1} parent=1 // pred_check_branch
      %70 = sbr.rel (0) target = $region25
    $region24: #{tpu_custom_call.1} parent=1 // pred_region
      %72 = vsyncadd [#allocation9], 0
      %s74 = sshll.u32 %s5, 4
      %s75 = int_to_ptr.hbm [resolvable:$true] %s74
      %s76 = sshll.u32 [#allocation10], 4
      %s77 = int_to_ptr.vmem [resolvable:$true] %s76
      %79 = dma.hbm_to_vmem [thread:$0]  %s75, 48, %s77, [#allocation9]
    $region25: #{tpu_custom_call.1} parent=1 // pred_fallthru
      _
    // Predicated region
    $region26: #{tpu_custom_call.1} parent=1 // pred_check
      _
    $region27: #{tpu_custom_call.1} parent=1 // pred_check_branch
      %81 = sbr.rel (0) target = $region29
    $region28: #{tpu_custom_call.1} parent=1 // pred_region
      %83 = dma.done [#allocation3], 128
    $region29: #{tpu_custom_call.1} parent=1 // pred_fallthru
      _
    // Predicated region
    $region30: #{tpu_custom_call.1} parent=1 // pred_check
      _
    $region31: #{tpu_custom_call.1} parent=1 // pred_check_branch
      %85 = sbr.rel (0) target = $region33
    $region32: #{tpu_custom_call.1} parent=1 // pred_region
      %87 = dma.done [#allocation6], 128
    $region33: #{tpu_custom_call.1} parent=1 // pred_fallthru
      _
    // Predicated region
    $region34: #{tpu_custom_call.1} parent=1 // pred_check
      _
    $region35: #{tpu_custom_call.1} parent=1 // pred_check_branch
      %89 = sbr.rel (0) target = $region37
    $region36: #{tpu_custom_call.1} parent=1 // pred_region
      %91 = dma.done [#allocation6], 3072
    $region37: #{tpu_custom_call.1} parent=1 // pred_fallthru
      _
    // Predicated region
    $region38: #{tpu_custom_call.1} parent=1 // pred_check
      _
    $region39: #{tpu_custom_call.1} parent=1 // pred_check_branch
      %93 = sbr.rel (0) target = $region41
    $region40: #{tpu_custom_call.1} parent=1 // pred_region
      %95 = dma.done [#allocation9], 3072
    $region41: #{tpu_custom_call.1} parent=1 // pred_fallthru
      _
    // Predicated region
    $region42: #{tpu_custom_call.1} parent=1 // pred_check
      _
    $region43: #{tpu_custom_call.1} parent=1 // pred_check_branch
      %97 = sbr.rel (0) target = $region45
    $region44: #{tpu_custom_call.1} parent=1 // pred_region
      %99 = dma.done [#allocation9], 48
    $region45: #{tpu_custom_call.1} parent=1 // pred_fallthru
      _
    %v100 = vld [vmem:[#allocation2] sm:$0xf]
    %v101 = vld [vmem:[#allocation2 + $0x4] sm:$0xf]
    %v102 = vld [vmem:[#allocation7] sm:$0xff]
    %v103 = vld [vmem:[#allocation7 + $0x8] sm:$0xf]
    %v104 = vld [vmem:[#allocation7 + $0xc] sm:$0xff]
    %v105 = vld [vmem:[#allocation7 + $0x14] sm:$0xf]
    %v106 = vld [vmem:[#allocation7 + $0x18] sm:$0xff]
    %v107 = vld [vmem:[#allocation7 + $0x20] sm:$0xf]
    %v108 = vld [vmem:[#allocation7 + $0x24] sm:$0xff]
    %v109 = vld [vmem:[#allocation7 + $0x2c] sm:$0xf]
    %v110 = vld [vmem:[#allocation7 + $0x30] sm:$0xff]
    %v111 = vld [vmem:[#allocation7 + $0x38] sm:$0xf]
    %v112 = vld [vmem:[#allocation7 + $0x3c] sm:$0xff]
    %v113 = vld [vmem:[#allocation7 + $0x44] sm:$0xf]
    %v114 = vld [vmem:[#allocation7 + $0x48] sm:$0xff]
    %v115 = vld [vmem:[#allocation7 + $0x50] sm:$0xf]
    %v116 = vld [vmem:[#allocation7 + $0x54] sm:$0xff]
    %v117 = vld [vmem:[#allocation7 + $0x5c] sm:$0xf]
    %v118 = vld [vmem:[#allocation7 + $0x60] sm:$0xff]
    %v119 = vld [vmem:[#allocation7 + $0x68] sm:$0xf]
    %v120 = vld [vmem:[#allocation7 + $0x6c] sm:$0xff]
    %v121 = vld [vmem:[#allocation7 + $0x74] sm:$0xf]
    %v122 = vld [vmem:[#allocation7 + $0x78] sm:$0xff]
    %v123 = vld [vmem:[#allocation7 + $0x80] sm:$0xf]
    %v124 = vld [vmem:[#allocation7 + $0x84] sm:$0xff]
    %v125 = vld [vmem:[#allocation7 + $0x8c] sm:$0xf]
    %v126 = vld [vmem:[#allocation7 + $0x90] sm:$0xff]
    %v127 = vld [vmem:[#allocation7 + $0x98] sm:$0xf]
    %v128 = vld [vmem:[#allocation7 + $0x9c] sm:$0xff]
    %v129 = vld [vmem:[#allocation7 + $0xa4] sm:$0xf]
    %v130 = vld [vmem:[#allocation7 + $0xa8] sm:$0xff]
    %v131 = vld [vmem:[#allocation7 + $0xb0] sm:$0xf]
    %v132 = vld [vmem:[#allocation7 + $0xb4] sm:$0xff]
    %v133 = vld [vmem:[#allocation7 + $0xbc] sm:$0xf]
    %v134 = vld [vmem:[%s4] sm:$0x7]
    %v136 = vperm.slane %v134, 0
    %v137 = vperm.slane %v134, 1
    %v138 = vperm.slane %v134, 2
    %v144 = vunpack.c.l.b16 %v100
    %v145 = vunpack.c.l.b16 %v101
    %v146 = vpack.c.b16 %v145, %v144
    %v180 = vunpack.c.l.b16 %v102
    %v181 = vunpack.c.h.b16 %v102
    %v182 = vunpack.c.l.b16 %v103
    %v183 = vunpack.c.l.b16 %v104
    %v184 = vunpack.c.h.b16 %v104
    %v185 = vunpack.c.l.b16 %v105
    %v186 = vunpack.c.l.b16 %v106
    %v187 = vunpack.c.h.b16 %v106
    %v188 = vunpack.c.l.b16 %v107
    %v189 = vunpack.c.l.b16 %v108
    %v190 = vunpack.c.h.b16 %v108
    %v191 = vunpack.c.l.b16 %v109
    %v192 = vunpack.c.l.b16 %v110
    %v193 = vunpack.c.h.b16 %v110
    %v194 = vunpack.c.l.b16 %v111
    %v195 = vunpack.c.l.b16 %v112
    %v196 = vunpack.c.h.b16 %v112
    %v197 = vunpack.c.l.b16 %v113
    %v198 = vunpack.c.l.b16 %v114
    %v199 = vunpack.c.h.b16 %v114
    %v200 = vunpack.c.l.b16 %v115
    %v201 = vunpack.c.l.b16 %v116
    %v202 = vunpack.c.h.b16 %v116
    %v203 = vunpack.c.l.b16 %v117
    %v204 = vunpack.c.l.b16 %v118
    %v205 = vunpack.c.h.b16 %v118
    %v206 = vunpack.c.l.b16 %v119
    %v207 = vunpack.c.l.b16 %v120
    %v208 = vunpack.c.h.b16 %v120
    %v209 = vunpack.c.l.b16 %v121
    %v210 = vunpack.c.l.b16 %v122
    %v211 = vunpack.c.h.b16 %v122
    %v212 = vunpack.c.l.b16 %v123
    %v213 = vunpack.c.l.b16 %v124
    %v214 = vunpack.c.h.b16 %v124
    %v215 = vunpack.c.l.b16 %v125
    %v216 = vunpack.c.l.b16 %v126
    %v217 = vunpack.c.h.b16 %v126
    %v218 = vunpack.c.l.b16 %v127
    %v219 = vunpack.c.l.b16 %v128
    %v220 = vunpack.c.h.b16 %v128
    %v221 = vunpack.c.l.b16 %v129
    %v222 = vunpack.c.l.b16 %v130
    %v223 = vunpack.c.h.b16 %v130
    %v224 = vunpack.c.l.b16 %v131
    %v225 = vunpack.c.l.b16 %v132
    %v226 = vunpack.c.h.b16 %v132
    %v227 = vunpack.c.l.b16 %v133
    %v228 = vpack.c.b16 %v183, %v180
    %v229 = vpack.c.b16 %v184, %v181
    %v230 = vpack.c.b16 %v185, %v182
    %v231 = vpack.c.b16 %v189, %v186
    %v232 = vpack.c.b16 %v190, %v187
    %v233 = vpack.c.b16 %v191, %v188
    %v234 = vpack.c.b16 %v195, %v192
    %v235 = vpack.c.b16 %v196, %v193
    %v236 = vpack.c.b16 %v197, %v194
    %v237 = vpack.c.b16 %v201, %v198
    %v238 = vpack.c.b16 %v202, %v199
    %v239 = vpack.c.b16 %v203, %v200
    %v240 = vpack.c.b16 %v207, %v204
    %v241 = vpack.c.b16 %v208, %v205
    %v242 = vpack.c.b16 %v209, %v206
    %v243 = vpack.c.b16 %v213, %v210
    %v244 = vpack.c.b16 %v214, %v211
    %v245 = vpack.c.b16 %v215, %v212
    %v246 = vpack.c.b16 %v219, %v216
    %v247 = vpack.c.b16 %v220, %v217
    %v248 = vpack.c.b16 %v221, %v218
    %v249 = vpack.c.b16 %v225, %v222
    %v250 = vpack.c.b16 %v226, %v223
    %v251 = vpack.c.b16 %v227, %v224
    %276 = vmatpush.bf16.msra.mxu0 %v249
    %277 = vmatpush.bf16.msra.mxu0 %v246
    %278 = vmatpush.bf16.msra.mxu0 %v243
    %279 = vmatpush.bf16.msra.mxu0 %v240
    %280 = vmatpush.bf16.msra.mxu0 %v237
    %281 = vmatpush.bf16.msra.mxu0 %v234
    %282 = vmatpush.bf16.msra.mxu0 %v231
    %283 = vmatpush.bf16.msra.mxu0 %v228
    %284 = vmatmul.bf16.gmra.mxu0 %v146
    %v285 = vpop.f32.mrf.mxu0
    %v286 = vadd.f32 %v136, %v285
    %v287 = vpop.f32.mrf.mxu0
    %v288 = vadd.f32 %v136, %v287
    %289 = vdwg.mxu0
    %290 = vmatpush.bf16.msra.mxu0 %v250
    %291 = vmatpush.bf16.msra.mxu0 %v247
    %292 = vmatpush.bf16.msra.mxu0 %v244
    %293 = vmatpush.bf16.msra.mxu0 %v241
    %294 = vmatpush.bf16.msra.mxu0 %v238
    %295 = vmatpush.bf16.msra.mxu0 %v235
    %296 = vmatpush.bf16.msra.mxu0 %v232
    %297 = vmatpush.bf16.msra.mxu0 %v229
    %298 = vmatmul.bf16.gmra.mxu0 %v146
    %v299 = vpop.f32.mrf.mxu0
    %v300 = vadd.f32 %v137, %v299
    %v301 = vpop.f32.mrf.mxu0
    %v302 = vadd.f32 %v137, %v301
    %303 = vdwg.mxu0
    %304 = vmatpush.bf16.msra.mxu0 %v251
    %305 = vmatpush.bf16.msra.mxu0 %v248
    %306 = vmatpush.bf16.msra.mxu0 %v245
    %307 = vmatpush.bf16.msra.mxu0 %v242
    %308 = vmatpush.bf16.msra.mxu0 %v239
    %309 = vmatpush.bf16.msra.mxu0 %v236
    %310 = vmatpush.bf16.msra.mxu0 %v233
    %311 = vmatpush.bf16.msra.mxu0 %v230
    %312 = vmatmul.bf16.gmra.mxu0 %v146
    %v313 = vpop.f32.mrf.mxu0
    %v314 = vadd.f32 %v138, %v313
    %v315 = vpop.f32.mrf.mxu0
    %v316 = vadd.f32 %v138, %v315
    %317 = vdwg.mxu0
    %v318 = vld [vmem:[#allocation5] sm:$0xf]
    %v319 = vld [vmem:[#allocation5 + $0x4] sm:$0xf]
    %v320 = vld [vmem:[#allocation8] sm:$0xff]
    %v321 = vld [vmem:[#allocation8 + $0x8] sm:$0xf]
    %v322 = vld [vmem:[#allocation8 + $0xc] sm:$0xff]
    %v323 = vld [vmem:[#allocation8 + $0x14] sm:$0xf]
    %v324 = vld [vmem:[#allocation8 + $0x18] sm:$0xff]
    %v325 = vld [vmem:[#allocation8 + $0x20] sm:$0xf]
    %v326 = vld [vmem:[#allocation8 + $0x24] sm:$0xff]
    %v327 = vld [vmem:[#allocation8 + $0x2c] sm:$0xf]
    %v328 = vld [vmem:[#allocation8 + $0x30] sm:$0xff]
    %v329 = vld [vmem:[#allocation8 + $0x38] sm:$0xf]
    %v330 = vld [vmem:[#allocation8 + $0x3c] sm:$0xff]
    %v331 = vld [vmem:[#allocation8 + $0x44] sm:$0xf]
    %v332 = vld [vmem:[#allocation8 + $0x48] sm:$0xff]
    %v333 = vld [vmem:[#allocation8 + $0x50] sm:$0xf]
    %v334 = vld [vmem:[#allocation8 + $0x54] sm:$0xff]
    %v335 = vld [vmem:[#allocation8 + $0x5c] sm:$0xf]
    %v336 = vld [vmem:[#allocation8 + $0x60] sm:$0xff]
    %v337 = vld [vmem:[#allocation8 + $0x68] sm:$0xf]
    %v338 = vld [vmem:[#allocation8 + $0x6c] sm:$0xff]
    %v339 = vld [vmem:[#allocation8 + $0x74] sm:$0xf]
    %v340 = vld [vmem:[#allocation8 + $0x78] sm:$0xff]
    %v341 = vld [vmem:[#allocation8 + $0x80] sm:$0xf]
    %v342 = vld [vmem:[#allocation8 + $0x84] sm:$0xff]
    %v343 = vld [vmem:[#allocation8 + $0x8c] sm:$0xf]
    %v344 = vld [vmem:[#allocation8 + $0x90] sm:$0xff]
    %v345 = vld [vmem:[#allocation8 + $0x98] sm:$0xf]
    %v346 = vld [vmem:[#allocation8 + $0x9c] sm:$0xff]
    %v347 = vld [vmem:[#allocation8 + $0xa4] sm:$0xf]
    %v348 = vld [vmem:[#allocation8 + $0xa8] sm:$0xff]
    %v349 = vld [vmem:[#allocation8 + $0xb0] sm:$0xf]
    %v350 = vld [vmem:[#allocation8 + $0xb4] sm:$0xff]
    %v351 = vld [vmem:[#allocation8 + $0xbc] sm:$0xf]
    %v352 = vld [vmem:[#allocation10] sm:$0x7]
    %v354 = vperm.slane %v352, 0
    %v355 = vperm.slane %v352, 1
    %v356 = vperm.slane %v352, 2
    %v362 = vunpack.c.l.b16 %v318
    %v363 = vunpack.c.l.b16 %v319
    %v364 = vpack.c.b16 %v363, %v362
    %v398 = vunpack.c.l.b16 %v320
    %v399 = vunpack.c.h.b16 %v320
    %v400 = vunpack.c.l.b16 %v321
    %v401 = vunpack.c.l.b16 %v322
    %v402 = vunpack.c.h.b16 %v322
    %v403 = vunpack.c.l.b16 %v323
    %v404 = vunpack.c.l.b16 %v324
    %v405 = vunpack.c.h.b16 %v324
    %v406 = vunpack.c.l.b16 %v325
    %v407 = vunpack.c.l.b16 %v326
    %v408 = vunpack.c.h.b16 %v326
    %v409 = vunpack.c.l.b16 %v327
    %v410 = vunpack.c.l.b16 %v328
    %v411 = vunpack.c.h.b16 %v328
    %v412 = vunpack.c.l.b16 %v329
    %v413 = vunpack.c.l.b16 %v330
    %v414 = vunpack.c.h.b16 %v330
    %v415 = vunpack.c.l.b16 %v331
    %v416 = vunpack.c.l.b16 %v332
    %v417 = vunpack.c.h.b16 %v332
    %v418 = vunpack.c.l.b16 %v333
    %v419 = vunpack.c.l.b16 %v334
    %v420 = vunpack.c.h.b16 %v334
    %v421 = vunpack.c.l.b16 %v335
    %v422 = vunpack.c.l.b16 %v336
    %v423 = vunpack.c.h.b16 %v336
    %v424 = vunpack.c.l.b16 %v337
    %v425 = vunpack.c.l.b16 %v338
    %v426 = vunpack.c.h.b16 %v338
    %v427 = vunpack.c.l.b16 %v339
    %v428 = vunpack.c.l.b16 %v340
    %v429 = vunpack.c.h.b16 %v340
    %v430 = vunpack.c.l.b16 %v341
    %v431 = vunpack.c.l.b16 %v342
    %v432 = vunpack.c.h.b16 %v342
    %v433 = vunpack.c.l.b16 %v343
    %v434 = vunpack.c.l.b16 %v344
    %v435 = vunpack.c.h.b16 %v344
    %v436 = vunpack.c.l.b16 %v345
    %v437 = vunpack.c.l.b16 %v346
    %v438 = vunpack.c.h.b16 %v346
    %v439 = vunpack.c.l.b16 %v347
    %v440 = vunpack.c.l.b16 %v348
    %v441 = vunpack.c.h.b16 %v348
    %v442 = vunpack.c.l.b16 %v349
    %v443 = vunpack.c.l.b16 %v350
    %v444 = vunpack.c.h.b16 %v350
    %v445 = vunpack.c.l.b16 %v351
    %v446 = vpack.c.b16 %v401, %v398
    %v447 = vpack.c.b16 %v402, %v399
    %v448 = vpack.c.b16 %v403, %v400
    %v449 = vpack.c.b16 %v407, %v404
    %v450 = vpack.c.b16 %v408, %v405
    %v451 = vpack.c.b16 %v409, %v406
    %v452 = vpack.c.b16 %v413, %v410
    %v453 = vpack.c.b16 %v414, %v411
    %v454 = vpack.c.b16 %v415, %v412
    %v455 = vpack.c.b16 %v419, %v416
    %v456 = vpack.c.b16 %v420, %v417
    %v457 = vpack.c.b16 %v421, %v418
    %v458 = vpack.c.b16 %v425, %v422
    %v459 = vpack.c.b16 %v426, %v423
    %v460 = vpack.c.b16 %v427, %v424
    %v461 = vpack.c.b16 %v431, %v428
    %v462 = vpack.c.b16 %v432, %v429
    %v463 = vpack.c.b16 %v433, %v430
    %v464 = vpack.c.b16 %v437, %v434
    %v465 = vpack.c.b16 %v438, %v435
    %v466 = vpack.c.b16 %v439, %v436
    %v467 = vpack.c.b16 %v443, %v440
    %v468 = vpack.c.b16 %v444, %v441
    %v469 = vpack.c.b16 %v445, %v442
    %494 = vmatpush.bf16.msra.mxu0 %v467
    %495 = vmatpush.bf16.msra.mxu0 %v464
    %496 = vmatpush.bf16.msra.mxu0 %v461
    %497 = vmatpush.bf16.msra.mxu0 %v458
    %498 = vmatpush.bf16.msra.mxu0 %v455
    %499 = vmatpush.bf16.msra.mxu0 %v452
    %500 = vmatpush.bf16.msra.mxu0 %v449
    %501 = vmatpush.bf16.msra.mxu0 %v446
    %502 = vmatmul.bf16.gmra.mxu0 %v364
    %v503 = vpop.f32.mrf.mxu0
    %v504 = vadd.f32 %v354, %v503
    %v505 = vpop.f32.mrf.mxu0
    %v506 = vadd.f32 %v354, %v505
    %507 = vdwg.mxu0
    %508 = vmatpush.bf16.msra.mxu0 %v468
    %509 = vmatpush.bf16.msra.mxu0 %v465
    %510 = vmatpush.bf16.msra.mxu0 %v462
    %511 = vmatpush.bf16.msra.mxu0 %v459
    %512 = vmatpush.bf16.msra.mxu0 %v456
    %513 = vmatpush.bf16.msra.mxu0 %v453
    %514 = vmatpush.bf16.msra.mxu0 %v450
    %515 = vmatpush.bf16.msra.mxu0 %v447
    %516 = vmatmul.bf16.gmra.mxu0 %v364
    %v517 = vpop.f32.mrf.mxu0
    %v518 = vadd.f32 %v355, %v517
    %v519 = vpop.f32.mrf.mxu0
    %v520 = vadd.f32 %v355, %v519
    %521 = vdwg.mxu0
    %522 = vmatpush.bf16.msra.mxu0 %v469
    %523 = vmatpush.bf16.msra.mxu0 %v466
    %524 = vmatpush.bf16.msra.mxu0 %v463
    %525 = vmatpush.bf16.msra.mxu0 %v460
    %526 = vmatpush.bf16.msra.mxu0 %v457
    %527 = vmatpush.bf16.msra.mxu0 %v454
    %528 = vmatpush.bf16.msra.mxu0 %v451
    %529 = vmatpush.bf16.msra.mxu0 %v448
    %530 = vmatmul.bf16.gmra.mxu0 %v364
    %v531 = vpop.f32.mrf.mxu0
    %v532 = vadd.f32 %v356, %v531
    %v533 = vpop.f32.mrf.mxu0
    %v534 = vadd.f32 %v356, %v533
    %535 = vdwg.mxu0
    %v536 = vadd.f32 %v286, %v504
    %v537 = vadd.f32 %v288, %v506
    %v538 = vxor.u32 %v536, 2147483648
    %v539 = vxor.u32 %v537, 2147483648
    %v540 = vmul.f32 %v538, 1.442695
    %v541 = vpow.pop %v540
    %v542 = vmul.f32 %v539, 1.442695
    %v543 = vpow.pop %v542
    %v544 = vadd.f32 %v541, 1.0
    %v545 = vadd.f32 %v543, 1.0
    %v546 = vrcp.pop %v544
    %v547 = vmul.f32 %v544, %v546
    %v548 = vsub.f32 1.0, %v547
    %v549 = vmul.f32 %v546, %v548
    %v550 = vadd.f32 %v546, %v549
    %vm551 = vweird.f32 %v544
    %vm552 = vweird.f32 %v546
    %vm553 = vmor %vm551, %vm552
    %v554 = vsel %vm553, %v546, %v550
    %v555 = vand.u32 2147483647, %v544
    %vm556 = vcmp.eq.f32.partialorder %v555, 8.507059e+37
    %v557 = vand.u32 %v544, 2147483648
    %v558 = vor.u32 1.1754944e-38, %v557
    %v559 = vsel %vm556, %v558, %v554
    %v560 = vmul.f32 1.0, %v559
    %v561 = vrcp.pop %v545
    %v562 = vmul.f32 %v545, %v561
    %v563 = vsub.f32 1.0, %v562
    %v564 = vmul.f32 %v561, %v563
    %v565 = vadd.f32 %v561, %v564
    %vm566 = vweird.f32 %v545
    %vm567 = vweird.f32 %v561
    %vm568 = vmor %vm566, %vm567
    %v569 = vsel %vm568, %v561, %v565
    %v570 = vand.u32 2147483647, %v545
    %vm571 = vcmp.eq.f32.partialorder %v570, 8.507059e+37
    %v572 = vand.u32 %v545, 2147483648
    %v573 = vor.u32 1.1754944e-38, %v572
    %v574 = vsel %vm571, %v573, %v569
    %v575 = vmul.f32 1.0, %v574
    %v576 = vadd.f32 %v300, %v518
    %v577 = vadd.f32 %v302, %v520
    %v578 = vxor.u32 %v576, 2147483648
    %v579 = vxor.u32 %v577, 2147483648
    %v580 = vmul.f32 %v578, 1.442695
    %v581 = vpow.pop %v580
    %v582 = vmul.f32 %v579, 1.442695
    %v583 = vpow.pop %v582
    %v584 = vadd.f32 %v581, 1.0
    %v585 = vadd.f32 %v583, 1.0
    %v586 = vrcp.pop %v584
    %v587 = vmul.f32 %v584, %v586
    %v588 = vsub.f32 1.0, %v587
    %v589 = vmul.f32 %v586, %v588
    %v590 = vadd.f32 %v586, %v589
    %vm591 = vweird.f32 %v584
    %vm592 = vweird.f32 %v586
    %vm593 = vmor %vm591, %vm592
    %v594 = vsel %vm593, %v586, %v590
    %v595 = vand.u32 2147483647, %v584
    %vm596 = vcmp.eq.f32.partialorder %v595, 8.507059e+37
    %v597 = vand.u32 %v584, 2147483648
    %v598 = vor.u32 1.1754944e-38, %v597
    %v599 = vsel %vm596, %v598, %v594
    %v600 = vmul.f32 1.0, %v599
    %v601 = vrcp.pop %v585
    %v602 = vmul.f32 %v585, %v601
    %v603 = vsub.f32 1.0, %v602
    %v604 = vmul.f32 %v601, %v603
    %v605 = vadd.f32 %v601, %v604
    %vm606 = vweird.f32 %v585
    %vm607 = vweird.f32 %v601
    %vm608 = vmor %vm606, %vm607
    %v609 = vsel %vm608, %v601, %v605
    %v610 = vand.u32 2147483647, %v585
    %vm611 = vcmp.eq.f32.partialorder %v610, 8.507059e+37
    %v612 = vand.u32 %v585, 2147483648
    %v613 = vor.u32 1.1754944e-38, %v612
    %v614 = vsel %vm611, %v613, %v609
    %v615 = vmul.f32 1.0, %v614
    %v616 = vmul.f32 %v560, %v532
    %v617 = vmul.f32 %v575, %v534
    %v618 = vadd.f32 %v314, %v616
    %v619 = vadd.f32 %v316, %v617
    %v620 = vtanh.pop %v618
    %v621 = vtanh.pop %v619
    %v622 = vunpack.c.l.bf16 %v318
    %v623 = vunpack.c.l.bf16 %v319
    %v624 = vsub.f32 %v622, %v620
    %v625 = vsub.f32 %v623, %v621
    %v626 = vmul.f32 %v600, %v624
    %v627 = vmul.f32 %v615, %v625
    %v628 = vadd.f32 %v620, %v626
    %v629 = vadd.f32 %v621, %v627
    %630 = vst [vmem:[#allocation11] sm:$0xff] %v628
    %631 = vst [vmem:[#allocation11 + $0x8] sm:$0xff] %v629
    // Predicated region
    $region46: #{tpu_custom_call.1} parent=1 // pred_check
      _
    $region47: #{tpu_custom_call.1} parent=1 // pred_check_branch
      %633 = sbr.rel (0) target = $region49
    $region48: #{tpu_custom_call.1} parent=1 // pred_region
      %635 = vsyncadd [#allocation4], 0
      %s636 = sshll.u32 [#allocation11], 4
      %s637 = int_to_ptr.vmem [resolvable:$true] %s636
      %s638 = sshll.u32 %s6, 4
      %s639 = int_to_ptr.hbm [resolvable:$true] %s638
      %644 = dma.vmem_to_hbm [thread:$0]  %s637, 256, %s639, [#allocation4], 128, 128, 8
    $region49: #{tpu_custom_call.1} parent=1 // pred_fallthru
      _
    // Predicated region
    $region50: #{tpu_custom_call.1} parent=1 // pred_check
      _
    $region51: #{tpu_custom_call.1} parent=1 // pred_check_branch
      %646 = sbr.rel (0) target = $region53
    $region52: #{tpu_custom_call.1} parent=1 // pred_region
      %648 = dma.done [#allocation4], 256
    $region53: #{tpu_custom_call.1} parent=1 // pred_fallthru
      _
    %649 = vsyncpa [#allocation3], 1
    %650 = vsyncpa [#allocation6], 1
    %651 = vsyncpa [#allocation9], 1
    %652 = vsyncpa [#allocation4], 1

// kernel: tpu_custom_call.1
$region0: #{tpu_custom_call.1}
  #allocation0 [shape = 'u32[]', space=smem, size = 0x4, offset = 0x4, fixed_abs, tag = 'smem constant byte address 0x4 - core index']
  #allocation1 [shape = 'u32[72,128]{1,0:T(1,128)}', space=vmem, size = 0x9000, scoped, tag = 'internal scratch']
  %s0 = inlined_call_operand.hbm [shape: bf16[16,128], index: 0, kind: input, shape index: {}]
  %s1 = inlined_call_operand.hbm [shape: bf16[16,128], index: 1, kind: input, shape index: {}]
  %s2 = inlined_call_operand.hbm [shape: bf16[128,384], index: 2, kind: input, shape index: {}]
  %s3 = inlined_call_operand.hbm [shape: bf16[128,384], index: 3, kind: input, shape index: {}]
  %s4 = inlined_call_operand.vmem [shape: f32[1,384], index: 4, kind: input, shape index: {}]
  %s5 = inlined_call_operand.hbm [shape: f32[1,384], index: 5, kind: input, shape index: {}]
  %s6 = inlined_call_operand.hbm [shape: f32[16,128], index: 6, kind: output, shape index: {}]
  %s7 = sld [smem:[#allocation0]]
  $region54: #{tpu_custom_call.1} parent=0
    _
  %s9 = ssub.s32 1, %s7
  %s10 = scalar_select 0, %s9, %s7
  $region1: #{tpu_custom_call.1} parent=0
    #allocation2 [shape = 'u8[4096]{0}', space=vmem, size = 0x1000, scoped, tag = 'input window, operand 0, single buffered']
    #allocation3 [shape = 's32[1]{0}', space=sflag, size = 0x4, scoped, tag = 'scoped memory for tpu_custom_call.1']
    #allocation4 [shape = 's32[1]{0}', space=sflag, size = 0x4, scoped, tag = 'scoped memory for tpu_custom_call.1']
    #allocation5 [shape = 'u8[4096]{0}', space=vmem, size = 0x1000, scoped, tag = 'input window, operand 1, single buffered']
    #allocation6 [shape = 's32[1]{0}', space=sflag, size = 0x4, scoped, tag = 'scoped memory for tpu_custom_call.1']
    #allocation7 [shape = 'u8[98304]{0}', space=vmem, size = 0x18000, scoped, tag = 'input window, operand 2, single buffered']
    #allocation8 [shape = 'u8[98304]{0}', space=vmem, size = 0x18000, scoped, tag = 'input window, operand 3, single buffered']
    #allocation9 [shape = 's32[1]{0}', space=sflag, size = 0x4, scoped, tag = 'scoped memory for tpu_custom_call.1']
    #allocation10 [shape = 'u8[1536]{0}', space=vmem, size = 0x800, scoped, tag = 'input window, operand 5, single buffered']
    #allocation11 [shape = 'u8[8192]{0}', space=vmem, size = 0x2000, scoped, tag = 'output window, operand 0, single buffered']
    %11 = vsyncpa [#allocation3], 0
    %12 = vsyncpa [#allocation6], 0
    %13 = vsyncpa [#allocation9], 0
    %14 = vsyncpa [#allocation4], 0
    // Predicated region
    $region2: #{tpu_custom_call.1} parent=1 // pred_check
      _
    $region3: #{tpu_custom_call.1} parent=1 // pred_check_branch
      %16 = sbr.rel (0) target = $region5
    $region4: #{tpu_custom_call.1} parent=1 // pred_region
      %18 = vsyncadd [#allocation3], 0
      %s19 = sshll.u32 %s0, 4
      %s20 = int_to_ptr.hbm [resolvable:$true] %s19
      %s21 = sshll.u32 [#allocation2], 4
      %s22 = int_to_ptr.vmem [resolvable:$true] %s21
      %27 = dma.hbm_to_vmem [thread:$0]  %s20, 128, %s22, [#allocation3], 64, 64, 4
    $region5: #{tpu_custom_call.1} parent=1 // pred_fallthru
      _
    // Predicated region
    $region6: #{tpu_custom_call.1} parent=1 // pred_check
      _
    $region7: #{tpu_custom_call.1} parent=1 // pred_check_branch
      %29 = sbr.rel (0) target = $region9
    $region8: #{tpu_custom_call.1} parent=1 // pred_region
      %31 = vsyncadd [#allocation6], 0
      %s32 = sshll.u32 %s1, 4
      %s33 = int_to_ptr.hbm [resolvable:$true] %s32
      %s34 = sshll.u32 [#allocation5], 4
      %s35 = int_to_ptr.vmem [resolvable:$true] %s34
      %40 = dma.hbm_to_vmem [thread:$0]  %s33, 128, %s35, [#allocation6], 64, 64, 4
    $region9: #{tpu_custom_call.1} parent=1 // pred_fallthru
      _
    // Predicated region
    $region10: #{tpu_custom_call.1} parent=1 // pred_check
      _
    $region11: #{tpu_custom_call.1} parent=1 // pred_check_branch
      %42 = sbr.rel (0) target = $region13
    $region12: #{tpu_custom_call.1} parent=1 // pred_region
      %44 = vsyncadd [#allocation6], 0
      %s45 = sshll.u32 %s2, 4
      %s46 = int_to_ptr.hbm [resolvable:$true] %s45
      %s47 = sshll.u32 [#allocation7], 4
      %s48 = int_to_ptr.vmem [resolvable:$true] %s47
      %53 = dma.hbm_to_vmem [thread:$0]  %s46, 3072, %s48, [#allocation6], 192, 192, 12
    $region13: #{tpu_custom_call.1} parent=1 // pred_fallthru
      _
    // Predicated region
    $region14: #{tpu_custom_call.1} parent=1 // pred_check
      _
    $region15: #{tpu_custom_call.1} parent=1 // pred_check_branch
      %55 = sbr.rel (0) target = $region17
    $region16: #{tpu_custom_call.1} parent=1 // pred_region
      %57 = vsyncadd [#allocation9], 0
      %s58 = sshll.u32 %s3, 4
      %s59 = int_to_ptr.hbm [resolvable:$true] %s58
      %s60 = sshll.u32 [#allocation8], 4
      %s61 = int_to_ptr.vmem [resolvable:$true] %s60
      %66 = dma.hbm_to_vmem [thread:$0]  %s59, 3072, %s61, [#allocation9], 192, 192, 12
    $region17: #{tpu_custom_call.1} parent=1 // pred_fallthru
      _
    // Predicated region
    $region18: #{tpu_custom_call.1} parent=1 // pred_check
      _
    $region19: #{tpu_custom_call.1} parent=1 // pred_check_branch
      %68 = sbr.rel (0) target = $region21
    $region20: #{tpu_custom_call.1} parent=1 // pred_region
      _
    $region21: #{tpu_custom_call.1} parent=1 // pred_fallthru
      _
    // Predicated region
    $region22: #{tpu_custom_call.1} parent=1 // pred_check
      _
    $region23: #{tpu_custom_call.1} parent=1 // pred_check_branch
      %70 = sbr.rel (0) target = $region25
    $region24: #{tpu_custom_call.1} parent=1 // pred_region
      %72 = vsyncadd [#allocation9], 0
      %s74 = sshll.u32 %s5, 4
      %s75 = int_to_ptr.hbm [resolvable:$true] %s74
      %s76 = sshll.u32 [#allocation10], 4
      %s77 = int_to_ptr.vmem [resolvable:$true] %s76
      %79 = dma.hbm_to_vmem [thread:$0]  %s75, 48, %s77, [#allocation9]
    $region25: #{tpu_custom_call.1} parent=1 // pred_fallthru
      _
    // Predicated region
    $region26: #{tpu_custom_call.1} parent=1 // pred_check
      _
    $region27: #{tpu_custom_call.1} parent=1 // pred_check_branch
      %81 = sbr.rel (0) target = $region29
    $region28: #{tpu_custom_call.1} parent=1 // pred_region
      %83 = dma.done [#allocation3], 128
    $region29: #{tpu_custom_call.1} parent=1 // pred_fallthru
      _
    // Predicated region
    $region30: #{tpu_custom_call.1} parent=1 // pred_check
      _
    $region31: #{tpu_custom_call.1} parent=1 // pred_check_branch
      %85 = sbr.rel (0) target = $region33
    $region32: #{tpu_custom_call.1} parent=1 // pred_region
      %87 = dma.done [#allocation6], 128
    $region33: #{tpu_custom_call.1} parent=1 // pred_fallthru
      _
    // Predicated region
    $region34: #{tpu_custom_call.1} parent=1 // pred_check
      _
    $region35: #{tpu_custom_call.1} parent=1 // pred_check_branch
      %89 = sbr.rel (0) target = $region37
    $region36: #{tpu_custom_call.1} parent=1 // pred_region
      %91 = dma.done [#allocation6], 3072
    $region37: #{tpu_custom_call.1} parent=1 // pred_fallthru
      _
    // Predicated region
    $region38: #{tpu_custom_call.1} parent=1 // pred_check
      _
    $region39: #{tpu_custom_call.1} parent=1 // pred_check_branch
      %93 = sbr.rel (0) target = $region41
    $region40: #{tpu_custom_call.1} parent=1 // pred_region
      %95 = dma.done [#allocation9], 3072
    $region41: #{tpu_custom_call.1} parent=1 // pred_fallthru
      _
    // Predicated region
    $region42: #{tpu_custom_call.1} parent=1 // pred_check
      _
    $region43: #{tpu_custom_call.1} parent=1 // pred_check_branch
      %97 = sbr.rel (0) target = $region45
    $region44: #{tpu_custom_call.1} parent=1 // pred_region
      %99 = dma.done [#allocation9], 48
    $region45: #{tpu_custom_call.1} parent=1 // pred_fallthru
      _
    %v100 = vld [vmem:[#allocation2] sm:$0xf]
    %v101 = vld [vmem:[#allocation2 + $0x4] sm:$0xf]
    %v102 = vld [vmem:[#allocation7] sm:$0xff]
    %v103 = vld [vmem:[#allocation7 + $0x8] sm:$0xf]
    %v104 = vld [vmem:[#allocation7 + $0xc] sm:$0xff]
    %v105 = vld [vmem:[#allocation7 + $0x14] sm:$0xf]
    %v106 = vld [vmem:[#allocation7 + $0x18] sm:$0xff]
    %v107 = vld [vmem:[#allocation7 + $0x20] sm:$0xf]
    %v108 = vld [vmem:[#allocation7 + $0x24] sm:$0xff]
    %v109 = vld [vmem:[#allocation7 + $0x2c] sm:$0xf]
    %v110 = vld [vmem:[#allocation7 + $0x30] sm:$0xff]
    %v111 = vld [vmem:[#allocation7 + $0x38] sm:$0xf]
    %v112 = vld [vmem:[#allocation7 + $0x3c] sm:$0xff]
    %v113 = vld [vmem:[#allocation7 + $0x44] sm:$0xf]
    %v114 = vld [vmem:[#allocation7 + $0x48] sm:$0xff]
    %v115 = vld [vmem:[#allocation7 + $0x50] sm:$0xf]
    %v116 = vld [vmem:[#allocation7 + $0x54] sm:$0xff]
    %v117 = vld [vmem:[#allocation7 + $0x5c] sm:$0xf]
    %v118 = vld [vmem:[#allocation7 + $0x60] sm:$0xff]
    %v119 = vld [vmem:[#allocation7 + $0x68] sm:$0xf]
    %v120 = vld [vmem:[#allocation7 + $0x6c] sm:$0xff]
    %v121 = vld [vmem:[#allocation7 + $0x74] sm:$0xf]
    %v122 = vld [vmem:[#allocation7 + $0x78] sm:$0xff]
    %v123 = vld [vmem:[#allocation7 + $0x80] sm:$0xf]
    %v124 = vld [vmem:[#allocation7 + $0x84] sm:$0xff]
    %v125 = vld [vmem:[#allocation7 + $0x8c] sm:$0xf]
    %v126 = vld [vmem:[#allocation7 + $0x90] sm:$0xff]
    %v127 = vld [vmem:[#allocation7 + $0x98] sm:$0xf]
    %v128 = vld [vmem:[#allocation7 + $0x9c] sm:$0xff]
    %v129 = vld [vmem:[#allocation7 + $0xa4] sm:$0xf]
    %v130 = vld [vmem:[#allocation7 + $0xa8] sm:$0xff]
    %v131 = vld [vmem:[#allocation7 + $0xb0] sm:$0xf]
    %v132 = vld [vmem:[#allocation7 + $0xb4] sm:$0xff]
    %v133 = vld [vmem:[#allocation7 + $0xbc] sm:$0xf]
    %v134 = vld [vmem:[%s4] sm:$0x7]
    %v136 = vperm.slane %v134, 0
    %v137 = vperm.slane %v134, 1
    %v138 = vperm.slane %v134, 2
    %v144 = vunpack.c.l.b16 %v100
    %v145 = vunpack.c.l.b16 %v101
    %v146 = vpack.c.b16 %v145, %v144
    %v180 = vunpack.c.l.b16 %v102
    %v181 = vunpack.c.h.b16 %v102
    %v182 = vunpack.c.l.b16 %v103
    %v183 = vunpack.c.l.b16 %v104
    %v184 = vunpack.c.h.b16 %v104
    %v185 = vunpack.c.l.b16 %v105
    %v186 = vunpack.c.l.b16 %v106
    %v187 = vunpack.c.h.b16 %v106
    %v188 = vunpack.c.l.b16 %v107
    %v189 = vunpack.c.l.b16 %v108
    %v190 = vunpack.c.h.b16 %v108
    %v191 = vunpack.c.l.b16 %v109
    %v192 = vunpack.c.l.b16 %v110
    %v193 = vunpack.c.h.b16 %v110
    %v194 = vunpack.c.l.b16 %v111
    %v195 = vunpack.c.l.b16 %v112
    %v196 = vunpack.c.h.b16 %v112
    %v197 = vunpack.c.l.b16 %v113
    %v198 = vunpack.c.l.b16 %v114
    %v199 = vunpack.c.h.b16 %v114
    %v200 = vunpack.c.l.b16 %v115
    %v201 = vunpack.c.l.b16 %v116
    %v202 = vunpack.c.h.b16 %v116
    %v203 = vunpack.c.l.b16 %v117
    %v204 = vunpack.c.l.b16 %v118
    %v205 = vunpack.c.h.b16 %v118
    %v206 = vunpack.c.l.b16 %v119
    %v207 = vunpack.c.l.b16 %v120
    %v208 = vunpack.c.h.b16 %v120
    %v209 = vunpack.c.l.b16 %v121
    %v210 = vunpack.c.l.b16 %v122
    %v211 = vunpack.c.h.b16 %v122
    %v212 = vunpack.c.l.b16 %v123
    %v213 = vunpack.c.l.b16 %v124
    %v214 = vunpack.c.h.b16 %v124
    %v215 = vunpack.c.l.b16 %v125
    %v216 = vunpack.c.l.b16 %v126
    %v217 = vunpack.c.h.b16 %v126
    %v218 = vunpack.c.l.b16 %v127
    %v219 = vunpack.c.l.b16 %v128
    %v220 = vunpack.c.h.b16 %v128
    %v221 = vunpack.c.l.b16 %v129
    %v222 = vunpack.c.l.b16 %v130
    %v223 = vunpack.c.h.b16 %v130
    %v224 = vunpack.c.l.b16 %v131
    %v225 = vunpack.c.l.b16 %v132
    %v226 = vunpack.c.h.b16 %v132
    %v227 = vunpack.c.l.b16 %v133
    %v228 = vpack.c.b16 %v183, %v180
    %v229 = vpack.c.b16 %v184, %v181
    %v230 = vpack.c.b16 %v185, %v182
    %v231 = vpack.c.b16 %v189, %v186
    %v232 = vpack.c.b16 %v190, %v187
    %v233 = vpack.c.b16 %v191, %v188
    %v234 = vpack.c.b16 %v195, %v192
    %v235 = vpack.c.b16 %v196, %v193
    %v236 = vpack.c.b16 %v197, %v194
    %v237 = vpack.c.b16 %v201, %v198
    %v238 = vpack.c.b16 %v202, %v199
    %v239 = vpack.c.b16 %v203, %v200
    %v240 = vpack.c.b16 %v207, %v204
    %v241 = vpack.c.b16 %v208, %v205
    %v242 = vpack.c.b16 %v209, %v206
    %v243 = vpack.c.b16 %v213, %v210
    %v244 = vpack.c.b16 %v214, %v211
    %v245 = vpack.c.b16 %v215, %v212
    %v246 = vpack.c.b16 %v219, %v216
    %v247 = vpack.c.b16 %v220, %v217
    %v248 = vpack.c.b16 %v221, %v218
    %v249 = vpack.c.b16 %v225, %v222
    %v250 = vpack.c.b16 %v226, %v223
    %v251 = vpack.c.b16 %v227, %v224
    %276 = vmatpush.bf16.msra.mxu0 %v249
    %277 = vmatpush.bf16.msra.mxu0 %v246
    %278 = vmatpush.bf16.msra.mxu0 %v243
    %279 = vmatpush.bf16.msra.mxu0 %v240
    %280 = vmatpush.bf16.msra.mxu0 %v237
    %281 = vmatpush.bf16.msra.mxu0 %v234
    %282 = vmatpush.bf16.msra.mxu0 %v231
    %283 = vmatpush.bf16.msra.mxu0 %v228
    %284 = vmatmul.bf16.gmra.mxu0 %v146
    %v285 = vpop.f32.mrf.mxu0
    %v286 = vadd.f32 %v136, %v285
    %v287 = vpop.f32.mrf.mxu0
    %v288 = vadd.f32 %v136, %v287
    %289 = vdwg.mxu0
    %290 = vmatpush.bf16.msra.mxu0 %v250
    %291 = vmatpush.bf16.msra.mxu0 %v247
    %292 = vmatpush.bf16.msra.mxu0 %v244
    %293 = vmatpush.bf16.msra.mxu0 %v241
    %294 = vmatpush.bf16.msra.mxu0 %v238
    %295 = vmatpush.bf16.msra.mxu0 %v235
    %296 = vmatpush.bf16.msra.mxu0 %v232
    %297 = vmatpush.bf16.msra.mxu0 %v229
    %298 = vmatmul.bf16.gmra.mxu0 %v146
    %v299 = vpop.f32.mrf.mxu0
    %v300 = vadd.f32 %v137, %v299
    %v301 = vpop.f32.mrf.mxu0
    %v302 = vadd.f32 %v137, %v301
    %303 = vdwg.mxu0
    %304 = vmatpush.bf16.msra.mxu0 %v251
    %305 = vmatpush.bf16.msra.mxu0 %v248
    %306 = vmatpush.bf16.msra.mxu0 %v245
    %307 = vmatpush.bf16.msra.mxu0 %v242
    %308 = vmatpush.bf16.msra.mxu0 %v239
    %309 = vmatpush.bf16.msra.mxu0 %v236
    %310 = vmatpush.bf16.msra.mxu0 %v233
    %311 = vmatpush.bf16.msra.mxu0 %v230
    %312 = vmatmul.bf16.gmra.mxu0 %v146
    %v313 = vpop.f32.mrf.mxu0
    %v314 = vadd.f32 %v138, %v313
    %v315 = vpop.f32.mrf.mxu0
    %v316 = vadd.f32 %v138, %v315
    %317 = vdwg.mxu0
    %v318 = vld [vmem:[#allocation5] sm:$0xf]
    %v319 = vld [vmem:[#allocation5 + $0x4] sm:$0xf]
    %v320 = vld [vmem:[#allocation8] sm:$0xff]
    %v321 = vld [vmem:[#allocation8 + $0x8] sm:$0xf]
    %v322 = vld [vmem:[#allocation8 + $0xc] sm:$0xff]
    %v323 = vld [vmem:[#allocation8 + $0x14] sm:$0xf]
    %v324 = vld [vmem:[#allocation8 + $0x18] sm:$0xff]
    %v325 = vld [vmem:[#allocation8 + $0x20] sm:$0xf]
    %v326 = vld [vmem:[#allocation8 + $0x24] sm:$0xff]
    %v327 = vld [vmem:[#allocation8 + $0x2c] sm:$0xf]
    %v328 = vld [vmem:[#allocation8 + $0x30] sm:$0xff]
    %v329 = vld [vmem:[#allocation8 + $0x38] sm:$0xf]
    %v330 = vld [vmem:[#allocation8 + $0x3c] sm:$0xff]
    %v331 = vld [vmem:[#allocation8 + $0x44] sm:$0xf]
    %v332 = vld [vmem:[#allocation8 + $0x48] sm:$0xff]
    %v333 = vld [vmem:[#allocation8 + $0x50] sm:$0xf]
    %v334 = vld [vmem:[#allocation8 + $0x54] sm:$0xff]
    %v335 = vld [vmem:[#allocation8 + $0x5c] sm:$0xf]
    %v336 = vld [vmem:[#allocation8 + $0x60] sm:$0xff]
    %v337 = vld [vmem:[#allocation8 + $0x68] sm:$0xf]
    %v338 = vld [vmem:[#allocation8 + $0x6c] sm:$0xff]
    %v339 = vld [vmem:[#allocation8 + $0x74] sm:$0xf]
    %v340 = vld [vmem:[#allocation8 + $0x78] sm:$0xff]
    %v341 = vld [vmem:[#allocation8 + $0x80] sm:$0xf]
    %v342 = vld [vmem:[#allocation8 + $0x84] sm:$0xff]
    %v343 = vld [vmem:[#allocation8 + $0x8c] sm:$0xf]
    %v344 = vld [vmem:[#allocation8 + $0x90] sm:$0xff]
    %v345 = vld [vmem:[#allocation8 + $0x98] sm:$0xf]
    %v346 = vld [vmem:[#allocation8 + $0x9c] sm:$0xff]
    %v347 = vld [vmem:[#allocation8 + $0xa4] sm:$0xf]
    %v348 = vld [vmem:[#allocation8 + $0xa8] sm:$0xff]
    %v349 = vld [vmem:[#allocation8 + $0xb0] sm:$0xf]
    %v350 = vld [vmem:[#allocation8 + $0xb4] sm:$0xff]
    %v351 = vld [vmem:[#allocation8 + $0xbc] sm:$0xf]
    %v352 = vld [vmem:[#allocation10] sm:$0x7]
    %v354 = vperm.slane %v352, 0
    %v355 = vperm.slane %v352, 1
    %v356 = vperm.slane %v352, 2
    %v362 = vunpack.c.l.b16 %v318
    %v363 = vunpack.c.l.b16 %v319
    %v364 = vpack.c.b16 %v363, %v362
    %v398 = vunpack.c.l.b16 %v320
    %v399 = vunpack.c.h.b16 %v320
    %v400 = vunpack.c.l.b16 %v321
    %v401 = vunpack.c.l.b16 %v322
    %v402 = vunpack.c.h.b16 %v322
    %v403 = vunpack.c.l.b16 %v323
    %v404 = vunpack.c.l.b16 %v324
    %v405 = vunpack.c.h.b16 %v324
    %v406 = vunpack.c.l.b16 %v325
    %v407 = vunpack.c.l.b16 %v326
    %v408 = vunpack.c.h.b16 %v326
    %v409 = vunpack.c.l.b16 %v327
    %v410 = vunpack.c.l.b16 %v328
    %v411 = vunpack.c.h.b16 %v328
    %v412 = vunpack.c.l.b16 %v329
    %v413 = vunpack.c.l.b16 %v330
    %v414 = vunpack.c.h.b16 %v330
    %v415 = vunpack.c.l.b16 %v331
    %v416 = vunpack.c.l.b16 %v332
    %v417 = vunpack.c.h.b16 %v332
    %v418 = vunpack.c.l.b16 %v333
    %v419 = vunpack.c.l.b16 %v334
    %v420 = vunpack.c.h.b16 %v334
    %v421 = vunpack.c.l.b16 %v335
    %v422 = vunpack.c.l.b16 %v336
    %v423 = vunpack.c.h.b16 %v336
    %v424 = vunpack.c.l.b16 %v337
    %v425 = vunpack.c.l.b16 %v338
    %v426 = vunpack.c.h.b16 %v338
    %v427 = vunpack.c.l.b16 %v339
    %v428 = vunpack.c.l.b16 %v340
    %v429 = vunpack.c.h.b16 %v340
    %v430 = vunpack.c.l.b16 %v341
    %v431 = vunpack.c.l.b16 %v342
    %v432 = vunpack.c.h.b16 %v342
    %v433 = vunpack.c.l.b16 %v343
    %v434 = vunpack.c.l.b16 %v344
    %v435 = vunpack.c.h.b16 %v344
    %v436 = vunpack.c.l.b16 %v345
    %v437 = vunpack.c.l.b16 %v346
    %v438 = vunpack.c.h.b16 %v346
    %v439 = vunpack.c.l.b16 %v347
    %v440 = vunpack.c.l.b16 %v348
    %v441 = vunpack.c.h.b16 %v348
    %v442 = vunpack.c.l.b16 %v349
    %v443 = vunpack.c.l.b16 %v350
    %v444 = vunpack.c.h.b16 %v350
    %v445 = vunpack.c.l.b16 %v351
    %v446 = vpack.c.b16 %v401, %v398
    %v447 = vpack.c.b16 %v402, %v399
    %v448 = vpack.c.b16 %v403, %v400
    %v449 = vpack.c.b16 %v407, %v404
    %v450 = vpack.c.b16 %v408, %v405
    %v451 = vpack.c.b16 %v409, %v406
    %v452 = vpack.c.b16 %v413, %v410
    %v453 = vpack.c.b16 %v414, %v411
    %v454 = vpack.c.b16 %v415, %v412
    %v455 = vpack.c.b16 %v419, %v416
    %v456 = vpack.c.b16 %v420, %v417
    %v457 = vpack.c.b16 %v421, %v418
    %v458 = vpack.c.b16 %v425, %v422
    %v459 = vpack.c.b16 %v426, %v423
    %v460 = vpack.c.b16 %v427, %v424
    %v461 = vpack.c.b16 %v431, %v428
    %v462 = vpack.c.b16 %v432, %v429
    %v463 = vpack.c.b16 %v433, %v430
    %v464 = vpack.c.b16 %v437, %v434
    %v465 = vpack.c.b16 %v438, %v435
    %v466 = vpack.c.b16 %v439, %v436
    %v467 = vpack.c.b16 %v443, %v440
    %v468 = vpack.c.b16 %v444, %v441
    %v469 = vpack.c.b16 %v445, %v442
    %494 = vmatpush.bf16.msra.mxu0 %v467
    %495 = vmatpush.bf16.msra.mxu0 %v464
    %496 = vmatpush.bf16.msra.mxu0 %v461
    %497 = vmatpush.bf16.msra.mxu0 %v458
    %498 = vmatpush.bf16.msra.mxu0 %v455
    %499 = vmatpush.bf16.msra.mxu0 %v452
    %500 = vmatpush.bf16.msra.mxu0 %v449
    %501 = vmatpush.bf16.msra.mxu0 %v446
    %502 = vmatmul.bf16.gmra.mxu0 %v364
    %v503 = vpop.f32.mrf.mxu0
    %v504 = vadd.f32 %v354, %v503
    %v505 = vpop.f32.mrf.mxu0
    %v506 = vadd.f32 %v354, %v505
    %507 = vdwg.mxu0
    %508 = vmatpush.bf16.msra.mxu0 %v468
    %509 = vmatpush.bf16.msra.mxu0 %v465
    %510 = vmatpush.bf16.msra.mxu0 %v462
    %511 = vmatpush.bf16.msra.mxu0 %v459
    %512 = vmatpush.bf16.msra.mxu0 %v456
    %513 = vmatpush.bf16.msra.mxu0 %v453
    %514 = vmatpush.bf16.msra.mxu0 %v450
    %515 = vmatpush.bf16.msra.mxu0 %v447
    %516 = vmatmul.bf16.gmra.mxu0 %v364
    %v517 = vpop.f32.mrf.mxu0
    %v518 = vadd.f32 %v355, %v517
    %v519 = vpop.f32.mrf.mxu0
    %v520 = vadd.f32 %v355, %v519
    %521 = vdwg.mxu0
    %522 = vmatpush.bf16.msra.mxu0 %v469
    %523 = vmatpush.bf16.msra.mxu0 %v466
    %524 = vmatpush.bf16.msra.mxu0 %v463
    %525 = vmatpush.bf16.msra.mxu0 %v460
    %526 = vmatpush.bf16.msra.mxu0 %v457
    %527 = vmatpush.bf16.msra.mxu0 %v454
    %528 = vmatpush.bf16.msra.mxu0 %v451
    %529 = vmatpush.bf16.msra.mxu0 %v448
    %530 = vmatmul.bf16.gmra.mxu0 %v364
    %v531 = vpop.f32.mrf.mxu0
    %v532 = vadd.f32 %v356, %v531
    %v533 = vpop.f32.mrf.mxu0
    %v534 = vadd.f32 %v356, %v533
    %535 = vdwg.mxu0
    %v536 = vadd.f32 %v286, %v504
    %v537 = vadd.f32 %v288, %v506
    %v538 = vxor.u32 %v536, 2147483648
    %v539 = vxor.u32 %v537, 2147483648
    %v540 = vmul.f32 %v538, 1.442695
    %v541 = vpow.pop %v540
    %v542 = vmul.f32 %v539, 1.442695
    %v543 = vpow.pop %v542
    %v544 = vadd.f32 %v541, 1.0
    %v545 = vadd.f32 %v543, 1.0
    %v546 = vrcp.pop %v544
    %v547 = vmul.f32 %v544, %v546
    %v548 = vsub.f32 1.0, %v547
    %v549 = vmul.f32 %v546, %v548
    %v550 = vadd.f32 %v546, %v549
    %vm551 = vweird.f32 %v544
    %vm552 = vweird.f32 %v546
    %vm553 = vmor %vm551, %vm552
    %v554 = vsel %vm553, %v546, %v550
    %v555 = vand.u32 2147483647, %v544
    %vm556 = vcmp.eq.f32.partialorder %v555, 8.507059e+37
    %v557 = vand.u32 %v544, 2147483648
    %v558 = vor.u32 1.1754944e-38, %v557
    %v559 = vsel %vm556, %v558, %v554
    %v560 = vmul.f32 1.0, %v559
    %v561 = vrcp.pop %v545
    %v562 = vmul.f32 %v545, %v561
    %v563 = vsub.f32 1.0, %v562
    %v564 = vmul.f32 %v561, %v563
    %v565 = vadd.f32 %v561, %v564
    %vm566 = vweird.f32 %v545
    %vm567 = vweird.f32 %v561
    %vm568 = vmor %vm566, %vm567
    %v569 = vsel %vm568, %v561, %v565
    %v570 = vand.u32 2147483647, %v545
    %vm571 = vcmp.eq.f32.partialorder %v570, 8.507059e+37
    %v572 = vand.u32 %v545, 2147483648
    %v573 = vor.u32 1.1754944e-38, %v572
    %v574 = vsel %vm571, %v573, %v569
    %v575 = vmul.f32 1.0, %v574
    %v576 = vadd.f32 %v300, %v518
    %v577 = vadd.f32 %v302, %v520
    %v578 = vxor.u32 %v576, 2147483648
    %v579 = vxor.u32 %v577, 2147483648
    %v580 = vmul.f32 %v578, 1.442695
    %v581 = vpow.pop %v580
    %v582 = vmul.f32 %v579, 1.442695
    %v583 = vpow.pop %v582
    %v584 = vadd.f32 %v581, 1.0
    %v585 = vadd.f32 %v583, 1.0
    %v586 = vrcp.pop %v584
    %v587 = vmul.f32 %v584, %v586
    %v588 = vsub.f32 1.0, %v587
    %v589 = vmul.f32 %v586, %v588
    %v590 = vadd.f32 %v586, %v589
    %vm591 = vweird.f32 %v584
    %vm592 = vweird.f32 %v586
    %vm593 = vmor %vm591, %vm592
    %v594 = vsel %vm593, %v586, %v590
    %v595 = vand.u32 2147483647, %v584
    %vm596 = vcmp.eq.f32.partialorder %v595, 8.507059e+37
    %v597 = vand.u32 %v584, 2147483648
    %v598 = vor.u32 1.1754944e-38, %v597
    %v599 = vsel %vm596, %v598, %v594
    %v600 = vmul.f32 1.0, %v599
    %v601 = vrcp.pop %v585
    %v602 = vmul.f32 %v585, %v601
    %v603 = vsub.f32 1.0, %v602
    %v604 = vmul.f32 %v601, %v603
    %v605 = vadd.f32 %v601, %v604
    %vm606 = vweird.f32 %v585
    %vm607 = vweird.f32 %v601
    %vm608 = vmor %vm606, %vm607
    %v609 = vsel %vm608, %v601, %v605
    %v610 = vand.u32 2147483647, %v585
    %vm611 = vcmp.eq.f32.partialorder %v610, 8.507059e+37
    %v612 = vand.u32 %v585, 2147483648
    %v613 = vor.u32 1.1754944e-38, %v612
    %v614 = vsel %vm611, %v613, %v609
    %v615 = vmul.f32 1.0, %v614
    %v616 = vmul.f32 %v560, %v532
    %v617 = vmul.f32 %v575, %v534
    %v618 = vadd.f32 %v314, %v616
    %v619 = vadd.f32 %v316, %v617
    %v620 = vtanh.pop %v618
    %v621 = vtanh.pop %v619
    %v622 = vunpack.c.l.bf16 %v318
    %v623 = vunpack.c.l.bf16 %v319
    %v624 = vsub.f32 %v622, %v620
    %v625 = vsub.f32 %v623, %v621
    %v626 = vmul.f32 %v600, %v624
    %v627 = vmul.f32 %v615, %v625
    %v628 = vadd.f32 %v620, %v626
    %v629 = vadd.f32 %v621, %v627
    %630 = vst [vmem:[#allocation11] sm:$0xff] %v628
    %631 = vst [vmem:[#allocation11 + $0x8] sm:$0xff] %v629
    // Predicated region
    $region46: #{tpu_custom_call.1} parent=1 // pred_check
      _
    $region47: #{tpu_custom_call.1} parent=1 // pred_check_branch
      %633 = sbr.rel (0) target = $region49
    $region48: #{tpu_custom_call.1} parent=1 // pred_region
      %635 = vsyncadd [#allocation4], 0
      %s636 = sshll.u32 [#allocation11], 4
      %s637 = int_to_ptr.vmem [resolvable:$true] %s636
      %s638 = sshll.u32 %s6, 4
      %s639 = int_to_ptr.hbm [resolvable:$true] %s638
      %644 = dma.vmem_to_hbm [thread:$0]  %s637, 256, %s639, [#allocation4], 128, 128, 8
    $region49: #{tpu_custom_call.1} parent=1 // pred_fallthru
      _
    // Predicated region
    $region50: #{tpu_custom_call.1} parent=1 // pred_check
      _
    $region51: #{tpu_custom_call.1} parent=1 // pred_check_branch
      %646 = sbr.rel (0) target = $region53
    $region52: #{tpu_custom_call.1} parent=1 // pred_region
      %648 = dma.done [#allocation4], 256
    $region53: #{tpu_custom_call.1} parent=1 // pred_fallthru
      _
    %649 = vsyncpa [#allocation3], 1
    %650 = vsyncpa [#allocation6], 1
    %651 = vsyncpa [#allocation9], 1
    %652 = vsyncpa [#allocation4], 1

</llo_original>
